<compile_context>
chip_gen: v7x
topology: tpu7x:2x2x1
jax: 0.10.0
libtpu: 0.0.40
codegen_flags: <defaults>
</compile_context>

<pallas_src>
import functools
import math

import jax
import jax.numpy as jnp
from jax.experimental import pallas as pl
from jax.experimental.pallas import tpu as pltpu


_LANE_TILES = (512, 256, 128)
_SUBLANE_TILES = (512, 256, 128, 64, 32, 16, 8)
_PROJ_ROW_TILES = (2048, 1024, 512, 256, 128, 64, 32, 16, 8)

# Keep the f32 (heads, tq, tk) energy/p temporaries bounded so the kernel
# stays compute-bound (and fits v7x's smaller VMEM) at large head counts.
_SOFTMAX_BUDGET_BYTES = 12 * 1024 * 1024
# Explicit scoped-VMEM limit: > v5e's 16 MiB default, < v7x's 64 MiB physical.
_VMEM_LIMIT_BYTES = 48 * 1024 * 1024


def _pick_tile(dim, candidates):
    for t in candidates:
        if dim % t == 0:
            return t
    return dim


def _attention_tiles(q_len, k_len, heads):
    tq = _pick_tile(q_len, (256, 128, 64, 32, 16, 8))
    for tk in (512, 256, 128):
        if k_len % tk == 0 and 2 * heads * tq * tk * 4 <= _SOFTMAX_BUDGET_BYTES:
            return tq, tk
    return tq, _pick_tile(k_len, _LANE_TILES)


# ----------------------------------------------------------------------------
# Kernel 0: shared per-head projection, x @ W^T, as one flat matmul.
# ----------------------------------------------------------------------------
def _proj_kernel(x_ref, w_ref, o_ref):
    o_ref[...] = jnp.dot(x_ref[...], w_ref[...],
                         preferred_element_type=jnp.float32).astype(o_ref.dtype)


def _project(x_h, w_t):
    """x_h: (N, heads, L, head_dim) bf16; w_t: (head_dim, head_dim) bf16."""
    N, heads, L, head_dim = x_h.shape
    rows = N * heads * L
    x2 = x_h.reshape(rows, head_dim)
    tm = _pick_tile(rows, _PROJ_ROW_TILES)
    out = pl.pallas_call(
        _proj_kernel,
        out_shape=jax.ShapeDtypeStruct((rows, head_dim), jnp.bfloat16),
        grid=(rows // tm,),
        in_specs=[
            pl.BlockSpec((tm, head_dim), lambda i: (i, 0)),
            pl.BlockSpec((head_dim, head_dim), lambda i: (0, 0)),
        ],
        out_specs=pl.BlockSpec((tm, head_dim), lambda i: (i, 0)),
        compiler_params=pltpu.CompilerParams(
            dimension_semantics=("parallel",)),
    )(x2, w_t)
    return out.reshape(N, heads, L, head_dim)


# ----------------------------------------------------------------------------
# Kernel 1: fused multi-head flash attention.
#   grid = (batch, q_blocks, kv_blocks); K/V arrive pre-projected; Q is
#   projected once per q-block (kv-block 0) into a bf16 VMEM scratch.
# ----------------------------------------------------------------------------
def _attention_kernel(q_ref, k_ref, v_ref, mask_ref, wq_ref,
                      o_ref, q_scr, m_scr, l_scr, acc_scr, *, heads, head_dim):
    j = pl.program_id(2)  # kv-block index (reduction axis, innermost)

    @pl.when(j == 0)
    def _init():
        tq = q_ref.shape[2]
        q = q_ref[0]                                   # (heads, tq, head_dim) bf16
        # Softmax scale is already folded into wq (wrapper); f32 accumulation.
        qp = jnp.dot(q.reshape(heads * tq, head_dim), wq_ref[...],
                     preferred_element_type=jnp.float32)
        q_scr[...] = qp.astype(jnp.bfloat16).reshape(heads, tq, head_dim)
        m_scr[...] = jnp.full_like(m_scr, -jnp.inf)
        l_scr[...] = jnp.zeros_like(l_scr)
        acc_scr[...] = jnp.zeros_like(acc_scr)

    kh = k_ref[0]                                      # (heads, tk, head_dim) bf16
    vh = v_ref[0]                                      # (heads, tk, head_dim) bf16

    # energy[h, q, k] — per-head batched matmul on the MXU, f32 accumulation.
    # Q already carries the 1/sqrt(embed_size) scale.
    energy = jnp.einsum('hqd,hkd->hqk', q_scr[...], kh,
                        preferred_element_type=jnp.float32)

    # masked_fill(mask == 0, -1e20); mask broadcast over heads.
    m = mask_ref[0, 0]                                 # (tq, tk) int8
    energy = jnp.where(m[None, :, :] == 0, jnp.float32(-1e20), energy)

    # Online (flash) softmax — statistics kept in f32.
    m_prev = m_scr[...]                                # (heads, tq, 1)
    m_new = jnp.maximum(m_prev, jnp.max(energy, axis=-1, keepdims=True))
    alpha = jnp.exp(m_prev - m_new)
    p = jnp.exp(energy - m_new)                        # (heads, tq, tk) f32

    l_scr[...] = alpha * l_scr[...] + jnp.sum(p, axis=-1, keepdims=True)
    acc_scr[...] = alpha * acc_scr[...] + jnp.einsum(
        'hqk,hkd->hqd', p.astype(jnp.bfloat16), vh,
        preferred_element_type=jnp.float32)
    m_scr[...] = m_new

    @pl.when(j == pl.num_programs(2) - 1)
    def _finalize():
        inv_l = pl.reciprocal(l_scr[...], approx=True)         # (heads, tq, 1)
        # Single full-block store in the accumulator's native layout; the
        # concat-heads happens for free in fc_out's BlockSpec indexing.
        o_ref[0] = (acc_scr[...] * inv_l).astype(o_ref.dtype)


# ----------------------------------------------------------------------------
# Kernel 2: fc_out.  out[n, q, :] = sum_h x[n, h, q, :] @ Wt[h] + b
#   grid = (batch, q_blocks, n_blocks, heads) with `heads` as the reduction
#   axis; the per-head slab of the (E, E) weight is selected by BlockSpec.
# ----------------------------------------------------------------------------
def _fc_out_kernel(x_ref, w_ref, b_ref, o_ref, acc_ref):
    h = pl.program_id(3)

    @pl.when(h == 0)
    def _init():
        acc_ref[...] = jnp.zeros_like(acc_ref)

    acc_ref[...] += jnp.dot(x_ref[0, 0], w_ref[...],
                            preferred_element_type=jnp.float32)

    @pl.when(h == pl.num_programs(3) - 1)
    def _finalize():
        o_ref[0] = (acc_ref[...] + b_ref[...]).astype(o_ref.dtype)


# ----------------------------------------------------------------------------
# Wrapper
# ----------------------------------------------------------------------------
def self_attention_forward(values, keys, query, mask, params, *, embed_size, heads):
    N, q_len, _ = query.shape
    k_len = keys.shape[1]
    v_len = values.shape[1]
    head_dim = embed_size // heads
    assert head_dim * heads == embed_size
    assert k_len == v_len

    # (N, L, E) -> (N, heads, L, head_dim), bf16 for the MXU.
    def split_heads(x, L):
        return (x.reshape(N, L, heads, head_dim)
                 .transpose(0, 2, 1, 3)
                 .astype(jnp.bfloat16))

    q_h = split_heads(query, q_len)
    k_h = split_heads(keys, k_len)
    v_h = split_heads(values, v_len)
    mask_i8 = mask.astype(jnp.int8)

    scale = 1.0 / math.sqrt(embed_size)
    # Pre-transposed bf16 weights (y = x @ W^T -> x @ Wt); fold the softmax
    # scale into the Q weight once, off the hot path.
    wq_t = (params["wq"].T * scale).astype(jnp.bfloat16)
    wk_t = params["wk"].T.astype(jnp.bfloat16)
    wv_t = params["wv"].T.astype(jnp.bfloat16)

    # Hoisted K/V projections (computed exactly once).
    k_p = _project(k_h, wk_t)
    v_p = _project(v_h, wv_t)

    tq, tk = _attention_tiles(q_len, k_len, heads)

    attn = pl.pallas_call(
        functools.partial(_attention_kernel, heads=heads, head_dim=head_dim),
        out_shape=jax.ShapeDtypeStruct((N, heads, q_len, head_dim), jnp.bfloat16),
        grid=(N, q_len // tq, k_len // tk),
        in_specs=[
            pl.BlockSpec((1, heads, tq, head_dim), lambda n, i, j: (n, 0, i, 0)),
            pl.BlockSpec((1, heads, tk, head_dim), lambda n, i, j: (n, 0, j, 0)),
            pl.BlockSpec((1, heads, tk, head_dim), lambda n, i, j: (n, 0, j, 0)),
            pl.BlockSpec((1, 1, tq, tk), lambda n, i, j: (n, 0, i, j)),
            pl.BlockSpec((head_dim, head_dim), lambda n, i, j: (0, 0)),
        ],
        out_specs=pl.BlockSpec((1, heads, tq, head_dim), lambda n, i, j: (n, 0, i, 0)),
        scratch_shapes=[
            pltpu.VMEM((heads, tq, head_dim), jnp.bfloat16),   # projected Q
            pltpu.VMEM((heads, tq, 1), jnp.float32),           # m (running max)
            pltpu.VMEM((heads, tq, 1), jnp.float32),           # l (running sum)
            pltpu.VMEM((heads, tq, head_dim), jnp.float32),    # acc
        ],
        compiler_params=pltpu.CompilerParams(
            dimension_semantics=("parallel", "parallel", "arbitrary"),
            vmem_limit_bytes=_VMEM_LIMIT_BYTES),
    )(q_h, k_p, v_p, mask_i8, wq_t)

    # fc_out: reduce over heads; Wt slab per head selected via BlockSpec.
    w_out_t = params["w_out"].T.astype(jnp.bfloat16)            # (E_in, E_out)
    b_out = params["b_out"].reshape(1, embed_size).astype(jnp.float32)

    tq2 = _pick_tile(q_len, _SUBLANE_TILES)
    tn = _pick_tile(embed_size, _LANE_TILES)

    out = pl.pallas_call(
        _fc_out_kernel,
        out_shape=jax.ShapeDtypeStruct((N, q_len, embed_size), jnp.float32),
        grid=(N, q_len // tq2, embed_size // tn, heads),
        in_specs=[
            pl.BlockSpec((1, 1, tq2, head_dim), lambda n, i, j, h: (n, h, i, 0)),
            pl.BlockSpec((head_dim, tn), lambda n, i, j, h: (h, j)),
            pl.BlockSpec((1, tn), lambda n, i, j, h: (0, j)),
        ],
        out_specs=pl.BlockSpec((1, tq2, tn), lambda n, i, j, h: (n, i, j)),
        scratch_shapes=[pltpu.VMEM((tq2, tn), jnp.float32)],
        compiler_params=pltpu.CompilerParams(
            dimension_semantics=("parallel", "parallel", "parallel", "arbitrary"),
            vmem_limit_bytes=_VMEM_LIMIT_BYTES),
    )(attn, w_out_t, b_out)

    return out


# ----------------------------------------------------------------------------
# Deterministic parameter init (PyTorch nn.Linear default: U(-1/sqrt(fan_in), +))
# ----------------------------------------------------------------------------
def init_params(key, embed_size, heads):
    head_dim = embed_size // heads
    ks = jax.random.split(key, 5)

    def uniform(k, shape, fan_in):
        bound = 1.0 / math.sqrt(fan_in)
        return jax.random.uniform(k, shape, jnp.float32, -bound, bound)

    return {
        "wv": uniform(ks[0], (head_dim, head_dim), head_dim),
        "wk": uniform(ks[1], (head_dim, head_dim), head_dim),
        "wq": uniform(ks[2], (head_dim, head_dim), head_dim),
        "w_out": uniform(ks[3], (embed_size, embed_size), embed_size),
        "b_out": uniform(ks[4], (1, embed_size), embed_size),
    }


# ----------------------------------------------------------------------------
# Pure-JAX reference (mirrors the PyTorch forward exactly) for validation.
# ----------------------------------------------------------------------------
def reference_forward(values, keys, query, mask, params, *, embed_size, heads):
    N, q_len, _ = query.shape
    k_len = keys.shape[1]
    v_len = values.shape[1]
    head_dim = embed_size // heads

    v = values.reshape(N, v_len, heads, head_dim)
    k = keys.reshape(N, k_len, heads, head_dim)
    q = query.reshape(N, q_len, heads, head_dim)

    v = jnp.einsum("nlhd,ed->nlhe", v, params["wv"])
    k = jnp.einsum("nlhd,ed->nlhe", k, params["wk"])
    q = jnp.einsum("nlhd,ed->nlhe", q, params["wq"])

    energy = jnp.einsum("nqhd,nkhd->nhqk", q, k)
    energy = jnp.where(mask == 0, -1e20, energy)
    attn = jax.nn.softmax(energy / math.sqrt(embed_size), axis=3)
    out = jnp.einsum("nhql,nlhd->nqhd", attn, v).reshape(N, q_len, heads * head_dim)
    out = out @ params["w_out"].T + params["b_out"][0]
    return out


if __name__ == "__main__":
    N = 2
    seq = 8
    embed_size = 32
    heads = 4

    key = jax.random.PRNGKey(0)
    k_v, k_k, k_q, k_p = jax.random.split(key, 4)

    values = jax.random.normal(k_v, (N, seq, embed_size), jnp.float32)
    keys_in = jax.random.normal(k_k, (N, seq, embed_size), jnp.float32)
    query = jax.random.normal(k_q, (N, seq, embed_size), jnp.float32)
    # causal mask, broadcast over heads: (N, 1, q_len, k_len)
    mask = jnp.broadcast_to(
        jnp.tril(jnp.ones((seq, seq), jnp.int32))[None, None], (N, 1, seq, seq)
    )

    params = init_params(k_p, embed_size, heads)

    out = self_attention_forward(values, keys_in, query, mask, params,
                                 embed_size=embed_size, heads=heads)
    out = jax.block_until_ready(out)

    ref = reference_forward(values, keys_in, query, mask, params,
                            embed_size=embed_size, heads=heads)
    assert out.shape == (N, seq, embed_size)
    # bf16 MXU inputs + bf16 intermediate (f32 accumulation everywhere) ->
    # relaxed tolerance vs the f32 reference.
    err = jnp.max(jnp.abs(out - ref))
    assert jnp.allclose(out, ref, atol=5e-2, rtol=5e-2), f"mismatch vs reference, max err {err}"

    print("KERNEL_OK")
</pallas_src>

<mosaic_0001>
module attributes {stable_mosaic.version = 11 : i64} {
  func.func @_proj_kernel(%arg0: i32, %arg1: memref<64x8xbf16, #tpu.memory_space<vmem>>, %arg2: memref<8x8xbf16, #tpu.memory_space<vmem>>, %arg3: memref<64x8xbf16, #tpu.memory_space<vmem>>) attributes {dimension_semantics = [#tpu.dimension_semantics<parallel>], iteration_bounds = array<i64: 1>, scalar_prefetch = 0 : i64, scratch_operands = 0 : i64, tpu.core_type = #tpu.core_type<tc>, window_params = [{transform_indices = @transform_0, window_bounds = array<i64: 64, 8>}, {pipeline_mode = #tpu.pipeline_mode<synchronous>, transform_indices = @transform_1, window_bounds = array<i64: 8, 8>}, {transform_indices = @transform_2, window_bounds = array<i64: 64, 8>}]} {
    %c0 = arith.constant 0 : index
    %c0_0 = arith.constant 0 : index
    %0 = vector.load %arg1[%c0, %c0_0] : memref<64x8xbf16, #tpu.memory_space<vmem>>, vector<64x8xbf16>
    %c0_1 = arith.constant 0 : index
    %c0_2 = arith.constant 0 : index
    %1 = vector.load %arg2[%c0_1, %c0_2] : memref<8x8xbf16, #tpu.memory_space<vmem>>, vector<8x8xbf16>
    %cst = arith.constant dense<0.000000e+00> : vector<64x8xf32>
    %2 = tpu.matmul %0, %1, %cst {dimension_numbers = #tpu.dot_dimension_numbers<[1], [0], [0], [1], [0, 0, 1, 1], [], []>} : vector<64x8xbf16>, vector<8x8xbf16>, vector<64x8xf32> -> vector<64x8xf32>
    %3 = arith.truncf %2 : vector<64x8xf32> to vector<64x8xbf16>
    %c0_3 = arith.constant 0 : index
    %c0_4 = arith.constant 0 : index
    %4 = vector.load %arg3[%c0_3, %c0_4] : memref<64x8xbf16, #tpu.memory_space<vmem>>, vector<64x8xbf16>
    tpu.vector_store %arg3[%c0_3, %c0_4], %3 {strides = array<i32>} : memref<64x8xbf16, #tpu.memory_space<vmem>>, vector<64x8xbf16>,
    return
  }
  func.func @transform_0(%arg0: i32) -> (i32, i32) {
    %c0_i32 = arith.constant 0 : i32
    %c0_i32_0 = arith.constant 0 : i32
    return %arg0, %c0_i32 : i32, i32
  }
  func.func @transform_1(%arg0: i32) -> (i32, i32) {
    %c0_i32 = arith.constant 0 : i32
    %c0_i32_0 = arith.constant 0 : i32
    %c0_i32_1 = arith.constant 0 : i32
    return %c0_i32, %c0_i32_0 : i32, i32
  }
  func.func @transform_2(%arg0: i32) -> (i32, i32) {
    %c0_i32 = arith.constant 0 : i32
    %c0_i32_0 = arith.constant 0 : i32
    return %arg0, %c0_i32 : i32, i32
  }
}

</mosaic_0001>

<llo_original>
// kernel: tpu_custom_call.1
$region0: #{tpu_custom_call.1}
  #allocation0 [shape = 'u32[]', space=smem, size = 0x4, offset = 0x4, fixed_abs, tag = 'smem constant byte address 0x4 - core index']
  #allocation1 [shape = 'u32[144,128]{1,0:T(1,128)}', space=vmem, size = 0x12000, scoped, tag = 'internal scratch']
  %s0 = inlined_call_operand.vmem [shape: bf16[64,8], index: 0, kind: input, shape index: {}]
  %s1 = inlined_call_operand.vmem [shape: bf16[8,8], index: 1, kind: input, shape index: {}]
  %s2 = inlined_call_operand.vmem [shape: bf16[64,8], index: 2, kind: output, shape index: {}]
  %s3 = sld [smem:[#allocation0]]
  $region18: #{tpu_custom_call.1} parent=0
    _
  %s5 = ssub.s32 1, %s3
  %s6 = scalar_select 0, %s5, %s3
  // Predicated region
  $region2: #{tpu_custom_call.1} parent=0 // pred_check
    _
  $region3: #{tpu_custom_call.1} parent=0 // pred_check_branch
    %8 = sbr.rel (0) target = $region5
  $region4: #{tpu_custom_call.1} parent=0 // pred_region
    _
  $region5: #{tpu_custom_call.1} parent=0 // pred_fallthru
    _
  // Predicated region
  $region6: #{tpu_custom_call.1} parent=0 // pred_check
    _
  $region7: #{tpu_custom_call.1} parent=0 // pred_check_branch
    %10 = sbr.rel (0) target = $region9
  $region8: #{tpu_custom_call.1} parent=0 // pred_region
    _
  $region9: #{tpu_custom_call.1} parent=0 // pred_fallthru
    _
  %v12 = vld [vmem:[%s0] sm:$0xf]
  %v13 = vld [vmem:[%s0 + $0x4] sm:$0xf]
  %v14 = vld [vmem:[%s0 + $0x8] sm:$0xf]
  %v15 = vld [vmem:[%s0 + $0xc] sm:$0xf]
  %v16 = vld [vmem:[%s0 + $0x10] sm:$0xf]
  %v17 = vld [vmem:[%s0 + $0x14] sm:$0xf]
  %v18 = vld [vmem:[%s0 + $0x18] sm:$0xf]
  %v19 = vld [vmem:[%s0 + $0x1c] sm:$0xf]
  %v20 = vld [vmem:[%s1] sm:$0xf]
  %v29 = vunpack.c.l.b16 %v12
  %v30 = vunpack.c.l.b16 %v13
  %v31 = vunpack.c.l.b16 %v14
  %v32 = vunpack.c.l.b16 %v15
  %v33 = vunpack.c.l.b16 %v16
  %v34 = vunpack.c.l.b16 %v17
  %v35 = vunpack.c.l.b16 %v18
  %v36 = vunpack.c.l.b16 %v19
  %v37 = vpack.c.b16 %v30, %v29
  %v38 = vpack.c.b16 %v32, %v31
  %v39 = vpack.c.b16 %v34, %v33
  %v40 = vpack.c.b16 %v36, %v35
  %vm41 = vcmask 64512
  %v43 = vsel %vm41, %v37, 0
  %v46 = vsel %vm41, %v38, 0
  %v49 = vsel %vm41, %v39, 0
  %v52 = vsel %vm41, %v40, 0
  %vm54 = vcmask 1043456
  %v56 = vsel %vm54, %v20, 0
  %58 = vmatprep.subr.bf16.mxu0 0
  %59 = vmatpush1.bf16.msra.mxu0 %v56
  %60 = vmatprep.subr.bf16.mxu0 0
  %61 = vmatpush1.bf16.msra.mxu0 0
  %62 = vmatprep.subr.bf16.mxu0 0
  %63 = vmatpush1.bf16.msra.mxu0 0
  %64 = vmatprep.subr.bf16.mxu0 0
  %65 = vmatpush1.bf16.msra.mxu0 0
  %66 = vmatprep.subr.bf16.mxu0 0
  %67 = vmatpush1.bf16.msra.mxu0 0
  %68 = vmatprep.subr.bf16.mxu0 0
  %69 = vmatpush1.bf16.msra.mxu0 0
  %70 = vmatprep.subr.bf16.mxu0 0
  %71 = vmatpush1.bf16.msra.mxu0 0
  %72 = vmatprep.subr.bf16.mxu0 0
  %73 = vmatpush1.bf16.msra.mxu0 0
  %74 = vmatprep.subr.bf16.mxu0 0
  %75 = vmatpush1.bf16.msra.mxu0 0
  %76 = vmatprep.subr.bf16.mxu0 0
  %77 = vmatpush1.bf16.msra.mxu0 0
  %78 = vmatprep.subr.bf16.mxu0 0
  %79 = vmatpush1.bf16.msra.mxu0 0
  %80 = vmatprep.subr.bf16.mxu0 0
  %81 = vmatpush1.bf16.msra.mxu0 0
  %82 = vmatprep.subr.bf16.mxu0 0
  %83 = vmatpush1.bf16.msra.mxu0 0
  %84 = vmatprep.subr.bf16.mxu0 0
  %85 = vmatpush1.bf16.msra.mxu0 0
  %86 = vmatprep.subr.bf16.mxu0 0
  %87 = vmatpush1.bf16.msra.mxu0 0
  %88 = vmatprep.subr.bf16.mxu0 0
  %89 = vmatpush1.bf16.msra.mxu0 0
  %90 = vmatprep.mubr.bf16.mxu0 0
  %91 = vmatmul.mubr.bf16.gmra.mrb[0].mxu0 %v43
  %v92 = vpop.f32.mrb[0].mxu0
  %v93 = vadd.f32 0.0, %v92
  %v94 = vpop.f32.mrb[0].mxu0
  %v95 = vpop.f32.mrb[0].mxu0
  %v96 = vadd.f32 0.0, %v95
  %v97 = vpop.f32.mrb[0].mxu0
  %98 = vmatprep.mubr.bf16.mxu0 0
  %99 = vmatmul.mubr.bf16.gmra.mrb[0].mxu0 %v46
  %v100 = vpop.f32.mrb[0].mxu0
  %v101 = vadd.f32 0.0, %v100
  %v102 = vpop.f32.mrb[0].mxu0
  %v103 = vpop.f32.mrb[0].mxu0
  %v104 = vadd.f32 0.0, %v103
  %v105 = vpop.f32.mrb[0].mxu0
  %106 = vmatprep.mubr.bf16.mxu0 0
  %107 = vmatmul.mubr.bf16.gmra.mrb[0].mxu0 %v49
  %v108 = vpop.f32.mrb[0].mxu0
  %v109 = vadd.f32 0.0, %v108
  %v110 = vpop.f32.mrb[0].mxu0
  %v111 = vpop.f32.mrb[0].mxu0
  %v112 = vadd.f32 0.0, %v111
  %v113 = vpop.f32.mrb[0].mxu0
  %114 = vmatprep.mubr.bf16.mxu0 0
  %115 = vmatmul.mubr.bf16.gmra.mrb[0].mxu0 %v52
  %v116 = vpop.f32.mrb[0].mxu0
  %v117 = vadd.f32 0.0, %v116
  %v118 = vpop.f32.mrb[0].mxu0
  %v119 = vpop.f32.mrb[0].mxu0
  %v120 = vadd.f32 0.0, %v119
  %v121 = vpop.f32.mrb[0].mxu0
  %122 = vdwg.mxu0
  %v123 = vpack.c.bf16 %v96, %v93
  %v124 = vpack.c.bf16 %v104, %v101
  %v125 = vpack.c.bf16 %v112, %v109
  %v126 = vpack.c.bf16 %v120, %v117
  %v131 = vunpack.c.l.b16 %v123
  %v132 = vunpack.c.h.b16 %v123
  %v133 = vunpack.c.l.b16 %v124
  %v134 = vunpack.c.h.b16 %v124
  %v135 = vunpack.c.l.b16 %v125
  %v136 = vunpack.c.h.b16 %v125
  %v137 = vunpack.c.l.b16 %v126
  %v138 = vunpack.c.h.b16 %v126
  %v139 = vpack.c.b16 %v131, %v131
  %v140 = vpack.c.b16 %v132, %v132
  %v141 = vpack.c.b16 %v133, %v133
  %v142 = vpack.c.b16 %v134, %v134
  %v143 = vpack.c.b16 %v135, %v135
  %v144 = vpack.c.b16 %v136, %v136
  %v145 = vpack.c.b16 %v137, %v137
  %v146 = vpack.c.b16 %v138, %v138
  %vm155 = vcmask 60416
  %156 = vst.msk [vmem:[%s2] sm:$0xf] %vm155, %v139
  %157 = vst.msk [vmem:[%s2 + $0x4] sm:$0xf] %vm155, %v140
  %158 = vst.msk [vmem:[%s2 + $0x8] sm:$0xf] %vm155, %v141
  %159 = vst.msk [vmem:[%s2 + $0xc] sm:$0xf] %vm155, %v142
  %160 = vst.msk [vmem:[%s2 + $0x10] sm:$0xf] %vm155, %v143
  %161 = vst.msk [vmem:[%s2 + $0x14] sm:$0xf] %vm155, %v144
  %162 = vst.msk [vmem:[%s2 + $0x18] sm:$0xf] %vm155, %v145
  %163 = vst.msk [vmem:[%s2 + $0x1c] sm:$0xf] %vm155, %v146
  // Predicated region
  $region10: #{tpu_custom_call.1} parent=0 // pred_check
    _
  $region11: #{tpu_custom_call.1} parent=0 // pred_check_branch
    %165 = sbr.rel (0) target = $region13
  $region12: #{tpu_custom_call.1} parent=0 // pred_region
    _
  $region13: #{tpu_custom_call.1} parent=0 // pred_fallthru
    _
  // Predicated region
  $region14: #{tpu_custom_call.1} parent=0 // pred_check
    _
  $region15: #{tpu_custom_call.1} parent=0 // pred_check_branch
    %167 = sbr.rel (0) target = $region17
  $region16: #{tpu_custom_call.1} parent=0 // pred_region
    _
  $region17: #{tpu_custom_call.1} parent=0 // pred_fallthru
    _

</llo_original>
